<compile_context>
chip_gen: v7x
topology: tpu7x:2x2x1
jax: 0.10.0
libtpu: 0.0.40
codegen_flags: <defaults>
</compile_context>

<pallas_src>
import math
import functools

import jax
import jax.numpy as jnp
from jax import lax
from jax.experimental import pallas as pl
from jax.experimental.pallas import tpu as pltpu

BN_EPS = 1e-5
LANE = 128


def _round_up(n, m):
    return ((n + m - 1) // m) * m


def _encoder_z_kernel(n_layers, n_samples, latent, latent_pad,
                      x_ref, w_in_ref, b_in_ref, w_h_ref, b_h_ref,
                      w_head_ref, b_head_ref, noise_ref,
                      mu_ref, sigma_ref, mean_ref, samples_ref):
    # ---- input_block: Linear -> ReLU -> Dropout(eval: id) -> BatchNorm1d ----
    # TODO(synk): stochastic dropout and training-mode batch statistics are not
    # modeled; eval-mode semantics used (BN scale pre-folded into w/b).
    h = jnp.dot(x_ref[...], w_in_ref[...], preferred_element_type=jnp.float32)
    h = jnp.maximum(h + b_in_ref[...], 0.0).astype(jnp.bfloat16)

    # ---- hidden blocks (n_layers deep copies of the same block) ----
    # TODO(synk): for very deep stacks on v7x (64 MiB VMEM), stream w_h one
    # layer at a time instead of keeping the whole stack resident.
    if n_layers > 0:
        def _layer(i, h):
            hi = jnp.dot(h, w_h_ref[i], preferred_element_type=jnp.float32)
            hi = jnp.maximum(hi + b_h_ref[i], 0.0)
            return hi.astype(jnp.bfloat16)
        h = lax.fori_loop(0, n_layers, _layer, h, unroll=(n_layers <= 8))

    # ---- fused mu / log_sigma head (single lane-dense MXU pass) ----
    heads = jnp.dot(h, w_head_ref[...], preferred_element_type=jnp.float32)
    heads = heads + b_head_ref[...]
    mu = heads[:, :latent]
    sigma = jnp.exp(heads[:, latent_pad:latent_pad + latent])

    mu_ref[...] = mu
    sigma_ref[...] = sigma

    # ---- reparameterized samples + arithmetic mean over samples ----
    noise_sum = jnp.zeros_like(mu)
    for i in range(n_samples):
        ni = noise_ref[i]
        samples_ref[i] = ni * sigma + mu
        noise_sum = noise_sum + ni
    mean_ref[...] = mu + sigma * (noise_sum * (1.0 / float(n_samples)))


def _prepare_params(params):
    """Fold BN eval scale into weights, zero-pad feature dims to multiples of
    128, fuse the mu/sigma heads, and cast matmul operands to bf16."""
    s = 1.0 / math.sqrt(1.0 + BN_EPS)  # BN eval with fresh running stats (0/1)

    w_in, b_in = params["w_in"], params["b_in"]
    w_h, b_h = params["w_h"], params["b_h"]
    w_mu, b_mu = params["w_mu"], params["b_mu"]
    w_sg, b_sg = params["w_sg"], params["b_sg"]

    in_dim, hid = w_in.shape
    lat = w_mu.shape[1]
    in_pad = _round_up(in_dim, LANE)
    hid_pad = _round_up(hid, LANE)
    lat_pad = _round_up(lat, LANE)

    def pad2(a, rows, cols):
        return jnp.pad(a, ((0, rows - a.shape[0]), (0, cols - a.shape[1])))

    prepped = dict(
        w_in=pad2(w_in * s, in_pad, hid_pad).astype(jnp.bfloat16),
        b_in=pad2(b_in * s, 1, hid_pad).astype(jnp.float32),
        w_h=jnp.pad(w_h * s, ((0, 0), (0, hid_pad - hid), (0, hid_pad - hid))
                    ).astype(jnp.bfloat16),
        b_h=jnp.pad(b_h * s, ((0, 0), (0, 0), (0, hid_pad - hid))
                    ).astype(jnp.float32),
        w_head=jnp.concatenate(
            [pad2(w_mu, hid_pad, lat_pad), pad2(w_sg, hid_pad, lat_pad)],
            axis=1).astype(jnp.bfloat16),
        b_head=jnp.concatenate(
            [pad2(b_mu, 1, lat_pad), pad2(b_sg, 1, lat_pad)],
            axis=1).astype(jnp.float32),
    )
    return prepped, (in_pad, hid_pad, lat_pad)


def encoder_z_forward(x, params, noise, *, n_layers, tile_b=128):
    """encoderZ forward. Returns (mu, sigma, mean_sample, samples)."""
    B, in_dim = x.shape
    latent = params["w_mu"].shape[1]
    n_samples = noise.shape[0]
    n_h_buf = params["w_h"].shape[0]

    prep, (in_pad, hid_pad, lat_pad) = _prepare_params(params)

    # Batch tiling: tile_b a multiple of 8 (ideally 128/256 at production B);
    # pad the batch so it divides evenly, slice the pad off at the end.
    tile_b = min(_round_up(tile_b, 8), _round_up(B, 8))
    b_pad = _round_up(B, tile_b)
    num_tiles = b_pad // tile_b

    x_p = jnp.pad(x, ((0, b_pad - B), (0, in_pad - in_dim))).astype(jnp.bfloat16)
    noise_p = jnp.pad(noise, ((0, 0), (0, b_pad - B), (0, 0))).astype(jnp.float32)

    kernel = functools.partial(_encoder_z_kernel, n_layers, n_samples,
                               latent, lat_pad)

    in_specs = [
        pl.BlockSpec((tile_b, in_pad), lambda b: (b, 0)),                 # x
        pl.BlockSpec((in_pad, hid_pad), lambda b: (0, 0)),                # w_in (resident)
        pl.BlockSpec((1, hid_pad), lambda b: (0, 0)),                     # b_in
        pl.BlockSpec((n_h_buf, hid_pad, hid_pad), lambda b: (0, 0, 0)),   # w_h
        pl.BlockSpec((n_h_buf, 1, hid_pad), lambda b: (0, 0, 0)),         # b_h
        pl.BlockSpec((hid_pad, 2 * lat_pad), lambda b: (0, 0)),           # w_head
        pl.BlockSpec((1, 2 * lat_pad), lambda b: (0, 0)),                 # b_head
        pl.BlockSpec((n_samples, tile_b, latent), lambda b: (0, b, 0)),   # noise
    ]
    out_specs = (
        pl.BlockSpec((tile_b, latent), lambda b: (b, 0)),                 # mu
        pl.BlockSpec((tile_b, latent), lambda b: (b, 0)),                 # sigma
        pl.BlockSpec((tile_b, latent), lambda b: (b, 0)),                 # mean_sample
        pl.BlockSpec((n_samples, tile_b, latent), lambda b: (0, b, 0)),   # samples
    )
    out_shapes = (
        jax.ShapeDtypeStruct((b_pad, latent), jnp.float32),
        jax.ShapeDtypeStruct((b_pad, latent), jnp.float32),
        jax.ShapeDtypeStruct((b_pad, latent), jnp.float32),
        jax.ShapeDtypeStruct((n_samples, b_pad, latent), jnp.float32),
    )

    mu, sigma, mean_sample, samples = pl.pallas_call(
        kernel,
        grid=(num_tiles,),
        in_specs=in_specs,
        out_specs=out_specs,
        out_shape=out_shapes,
        compiler_params=pltpu.CompilerParams(
            dimension_semantics=("parallel",),   # megacore batch sharding (v7x)
            vmem_limit_bytes=64 * 1024 * 1024,   # above v5e's 16 MiB default
        ),
    )(
        x_p,
        prep["w_in"], prep["b_in"], prep["w_h"], prep["b_h"],
        prep["w_head"], prep["b_head"],
        noise_p,
    )
    return mu[:B], sigma[:B], mean_sample[:B], samples[:, :B]


def init_params(key, input_dim, hidden_dim, latent_dim, n_layers):
    """Deterministic PyTorch-style (uniform +/- 1/sqrt(fan_in)) Linear init."""
    def linear_init(k, fan_in, fan_out):
        kw, kb = jax.random.split(k)
        bound = 1.0 / math.sqrt(fan_in)
        w = jax.random.uniform(kw, (fan_in, fan_out), jnp.float32, -bound, bound)
        b = jax.random.uniform(kb, (1, fan_out), jnp.float32, -bound, bound)
        return w, b

    k_in, k_h, k_mu, k_sg = jax.random.split(key, 4)
    w_in, b_in = linear_init(k_in, input_dim, hidden_dim)

    # hidden_block is constructed once and deepcopy'd n_layers times in the
    # PyTorch module, so every hidden layer starts with identical weights.
    w_h1, b_h1 = linear_init(k_h, hidden_dim, hidden_dim)
    reps = max(n_layers, 1)  # non-empty (unused if n_layers==0) buffer
    w_h = jnp.broadcast_to(w_h1, (reps, hidden_dim, hidden_dim)) + 0.0
    b_h = jnp.broadcast_to(b_h1, (reps, 1, hidden_dim)) + 0.0

    w_mu, b_mu = linear_init(k_mu, hidden_dim, latent_dim)
    w_sg, b_sg = linear_init(k_sg, hidden_dim, latent_dim)

    return dict(w_in=w_in, b_in=b_in, w_h=w_h, b_h=b_h,
                w_mu=w_mu, b_mu=b_mu, w_sg=w_sg, b_sg=b_sg)


if __name__ == "__main__":
    # Small shapes consistent with the module: x is (batch, input_dim).
    B, INPUT_DIM, HIDDEN_DIM, LATENT_DIM = 16, 16, 32, 8
    N_LAYERS, SAMPLES = 2, 3

    key = jax.random.PRNGKey(0)
    k_x, k_p, k_n = jax.random.split(key, 3)

    x = jax.random.normal(k_x, (B, INPUT_DIM), dtype=jnp.float32)
    params = init_params(k_p, INPUT_DIM, HIDDEN_DIM, LATENT_DIM, N_LAYERS)
    # torch.randn_like(sigma) for each of `samples` draws -> stacked noise tensor.
    noise = jax.random.normal(k_n, (SAMPLES, B, LATENT_DIM), dtype=jnp.float32)

    # tile_b=8 keeps the demo tiny while still exercising a 2-step batch grid;
    # use tile_b=128/256 at production batch sizes.
    mu, sigma, mean_sample, samples = encoder_z_forward(
        x, params, noise, n_layers=N_LAYERS, tile_b=8)
    jax.block_until_ready((mu, sigma, mean_sample, samples))

    assert mu.shape == (B, LATENT_DIM)
    assert sigma.shape == (B, LATENT_DIM)
    assert mean_sample.shape == (B, LATENT_DIM)
    assert samples.shape == (SAMPLES, B, LATENT_DIM)
    assert bool(jnp.all(jnp.isfinite(mu)))
    assert bool(jnp.all(sigma > 0.0))
    # mean_sample must equal the arithmetic mean of the returned samples.
    assert bool(jnp.allclose(mean_sample, jnp.mean(samples, axis=0),
                             atol=1e-4, rtol=1e-4))
    print("KERNEL_OK")
</pallas_src>

<mosaic_0001>
module attributes {stable_mosaic.version = 11 : i64} {
  func.func @_encoder_z_kernel(%arg0: i32, %arg1: memref<8x128xbf16, #tpu.memory_space<vmem>>, %arg2: memref<128x128xbf16, #tpu.memory_space<vmem>>, %arg3: memref<1x128xf32, #tpu.memory_space<vmem>>, %arg4: memref<2x128x128xbf16, #tpu.memory_space<vmem>>, %arg5: memref<2x1x128xf32, #tpu.memory_space<vmem>>, %arg6: memref<128x256xbf16, #tpu.memory_space<vmem>>, %arg7: memref<1x256xf32, #tpu.memory_space<vmem>>, %arg8: memref<3x8x8xf32, #tpu.memory_space<vmem>>, %arg9: memref<8x8xf32, #tpu.memory_space<vmem>>, %arg10: memref<8x8xf32, #tpu.memory_space<vmem>>, %arg11: memref<8x8xf32, #tpu.memory_space<vmem>>, %arg12: memref<3x8x8xf32, #tpu.memory_space<vmem>>) attributes {dimension_semantics = [#tpu.dimension_semantics<parallel>], iteration_bounds = array<i64: 2>, scalar_prefetch = 0 : i64, scratch_operands = 0 : i64, tpu.core_type = #tpu.core_type<tc>, window_params = [{transform_indices = @transform_0, window_bounds = array<i64: 8, 128>}, {pipeline_mode = #tpu.pipeline_mode<synchronous>, transform_indices = @transform_1, window_bounds = array<i64: 128, 128>}, {pipeline_mode = #tpu.pipeline_mode<synchronous>, transform_indices = @transform_2, window_bounds = array<i64: 1, 128>}, {pipeline_mode = #tpu.pipeline_mode<synchronous>, transform_indices = @transform_3, window_bounds = array<i64: 2, 128, 128>}, {pipeline_mode = #tpu.pipeline_mode<synchronous>, transform_indices = @transform_4, window_bounds = array<i64: 2, 1, 128>}, {pipeline_mode = #tpu.pipeline_mode<synchronous>, transform_indices = @transform_5, window_bounds = array<i64: 128, 256>}, {pipeline_mode = #tpu.pipeline_mode<synchronous>, transform_indices = @transform_6, window_bounds = array<i64: 1, 256>}, {transform_indices = @transform_7, window_bounds = array<i64: 3, 8, 8>}, {transform_indices = @transform_8, window_bounds = array<i64: 8, 8>}, {transform_indices = @transform_9, window_bounds = array<i64: 8, 8>}, {transform_indices = @transform_10, window_bounds = array<i64: 8, 8>}, {transform_indices = @transform_11, window_bounds = array<i64: 3, 8, 8>}]} {
    %c0 = arith.constant 0 : index
    %c0_0 = arith.constant 0 : index
    %0 = vector.load %arg1[%c0, %c0_0] : memref<8x128xbf16, #tpu.memory_space<vmem>>, vector<8x128xbf16>
    %c0_1 = arith.constant 0 : index
    %c0_2 = arith.constant 0 : index
    %1 = vector.load %arg2[%c0_1, %c0_2] : memref<128x128xbf16, #tpu.memory_space<vmem>>, vector<128x128xbf16>
    %cst = arith.constant dense<0.000000e+00> : vector<8x128xf32>
    %2 = tpu.matmul %0, %1, %cst {dimension_numbers = #tpu.dot_dimension_numbers<[1], [0], [0], [1], [0, 0, 1, 1], [], []>} : vector<8x128xbf16>, vector<128x128xbf16>, vector<8x128xf32> -> vector<8x128xf32>
    %c0_3 = arith.constant 0 : index
    %c0_4 = arith.constant 0 : index
    %3 = vector.load %arg3[%c0_3, %c0_4] : memref<1x128xf32, #tpu.memory_space<vmem>>, vector<1x128xf32>
    %4 = vector.broadcast %3 : vector<1x128xf32> to vector<8x128xf32>
    %5 = arith.addf %2, %4 : vector<8x128xf32>
    %cst_5 = arith.constant 0.000000e+00 : f32
    %6 = vector.broadcast %cst_5 : f32 to vector<8x128xf32>
    %7 = arith.maximumf %5, %6 : vector<8x128xf32>
    %8 = arith.truncf %7 : vector<8x128xf32> to vector<8x128xbf16>
    %c0_i32 = arith.constant 0 : i32
    %9 = arith.index_cast %c0_i32 : i32 to index
    %c0_6 = arith.constant 0 : index
    %c0_7 = arith.constant 0 : index
    %10 = vector.load %arg4[%9, %c0_6, %c0_7] : memref<2x128x128xbf16, #tpu.memory_space<vmem>>, vector<1x128x128xbf16>
    %11 = vector.shape_cast %10 : vector<1x128x128xbf16> to vector<128x128xbf16>
    %cst_8 = arith.constant dense<0.000000e+00> : vector<8x128xf32>
    %12 = tpu.matmul %8, %11, %cst_8 {dimension_numbers = #tpu.dot_dimension_numbers<[1], [0], [0], [1], [0, 0, 1, 1], [], []>} : vector<8x128xbf16>, vector<128x128xbf16>, vector<8x128xf32> -> vector<8x128xf32>
    %13 = arith.index_cast %c0_i32 : i32 to index
    %c0_9 = arith.constant 0 : index
    %c0_10 = arith.constant 0 : index
    %14 = vector.load %arg5[%13, %c0_9, %c0_10] : memref<2x1x128xf32, #tpu.memory_space<vmem>>, vector<1x1x128xf32>
    %15 = vector.shape_cast %14 : vector<1x1x128xf32> to vector<1x128xf32>
    %16 = vector.broadcast %15 : vector<1x128xf32> to vector<8x128xf32>
    %17 = arith.addf %12, %16 : vector<8x128xf32>
    %cst_11 = arith.constant 0.000000e+00 : f32
    %18 = vector.broadcast %cst_11 : f32 to vector<8x128xf32>
    %19 = arith.maximumf %17, %18 : vector<8x128xf32>
    %20 = arith.truncf %19 : vector<8x128xf32> to vector<8x128xbf16>
    %c1_i32 = arith.constant 1 : i32
    %21 = arith.index_cast %c1_i32 : i32 to index
    %c0_12 = arith.constant 0 : index
    %c0_13 = arith.constant 0 : index
    %22 = vector.load %arg4[%21, %c0_12, %c0_13] : memref<2x128x128xbf16, #tpu.memory_space<vmem>>, vector<1x128x128xbf16>
    %23 = vector.shape_cast %22 : vector<1x128x128xbf16> to vector<128x128xbf16>
    %cst_14 = arith.constant dense<0.000000e+00> : vector<8x128xf32>
    %24 = tpu.matmul %20, %23, %cst_14 {dimension_numbers = #tpu.dot_dimension_numbers<[1], [0], [0], [1], [0, 0, 1, 1], [], []>} : vector<8x128xbf16>, vector<128x128xbf16>, vector<8x128xf32> -> vector<8x128xf32>
    %25 = arith.index_cast %c1_i32 : i32 to index
    %c0_15 = arith.constant 0 : index
    %c0_16 = arith.constant 0 : index
    %26 = vector.load %arg5[%25, %c0_15, %c0_16] : memref<2x1x128xf32, #tpu.memory_space<vmem>>, vector<1x1x128xf32>
    %27 = vector.shape_cast %26 : vector<1x1x128xf32> to vector<1x128xf32>
    %28 = vector.broadcast %27 : vector<1x128xf32> to vector<8x128xf32>
    %29 = arith.addf %24, %28 : vector<8x128xf32>
    %cst_17 = arith.constant 0.000000e+00 : f32
    %30 = vector.broadcast %cst_17 : f32 to vector<8x128xf32>
    %31 = arith.maximumf %29, %30 : vector<8x128xf32>
    %32 = arith.truncf %31 : vector<8x128xf32> to vector<8x128xbf16>
    %c2_i32 = arith.constant 2 : i32
    %c0_18 = arith.constant 0 : index
    %c0_19 = arith.constant 0 : index
    %33 = vector.load %arg6[%c0_18, %c0_19] : memref<128x256xbf16, #tpu.memory_space<vmem>>, vector<128x256xbf16>
    %cst_20 = arith.constant dense<0.000000e+00> : vector<8x256xf32>
    %34 = tpu.matmul %32, %33, %cst_20 {dimension_numbers = #tpu.dot_dimension_numbers<[1], [0], [0], [1], [0, 0, 1, 1], [], []>} : vector<8x128xbf16>, vector<128x256xbf16>, vector<8x256xf32> -> vector<8x256xf32>
    %c0_21 = arith.constant 0 : index
    %c0_22 = arith.constant 0 : index
    %35 = vector.load %arg7[%c0_21, %c0_22] : memref<1x256xf32, #tpu.memory_space<vmem>>, vector<1x256xf32>
    %36 = vector.broadcast %35 : vector<1x256xf32> to vector<8x256xf32>
    %37 = arith.addf %34, %36 : vector<8x256xf32>
    %38 = vector.extract_strided_slice %37 {offsets = [0, 0], sizes = [8, 8], strides = [1, 1]} : vector<8x256xf32> to vector<8x8xf32>
    %39 = vector.extract_strided_slice %37 {offsets = [0, 128], sizes = [8, 8], strides = [1, 1]} : vector<8x256xf32> to vector<8x8xf32>
    %40 = math.exp %39 : vector<8x8xf32>
    %c0_23 = arith.constant 0 : index
    %c0_24 = arith.constant 0 : index
    %41 = vector.load %arg9[%c0_23, %c0_24] : memref<8x8xf32, #tpu.memory_space<vmem>>, vector<8x8xf32>
    tpu.vector_store %arg9[%c0_23, %c0_24], %38 {strides = array<i32>} : memref<8x8xf32, #tpu.memory_space<vmem>>, vector<8x8xf32>,
    %c0_25 = arith.constant 0 : index
    %c0_26 = arith.constant 0 : index
    %42 = vector.load %arg10[%c0_25, %c0_26] : memref<8x8xf32, #tpu.memory_space<vmem>>, vector<8x8xf32>
    tpu.vector_store %arg10[%c0_25, %c0_26], %40 {strides = array<i32>} : memref<8x8xf32, #tpu.memory_space<vmem>>, vector<8x8xf32>,
    %cst_27 = arith.constant 0.000000e+00 : f32
    %43 = vector.broadcast %cst_27 : f32 to vector<8x8xf32>
    %c0_28 = arith.constant 0 : index
    %c0_29 = arith.constant 0 : index
    %c0_30 = arith.constant 0 : index
    %44 = vector.load %arg8[%c0_28, %c0_29, %c0_30] : memref<3x8x8xf32, #tpu.memory_space<vmem>>, vector<1x8x8xf32>
    %45 = vector.shape_cast %44 : vector<1x8x8xf32> to vector<8x8xf32>
    %46 = arith.mulf %45, %40 : vector<8x8xf32>
    %47 = arith.addf %46, %38 : vector<8x8xf32>
    %c0_31 = arith.constant 0 : index
    %c0_32 = arith.constant 0 : index
    %c0_33 = arith.constant 0 : index
    %48 = vector.load %arg12[%c0_31, %c0_32, %c0_33] : memref<3x8x8xf32, #tpu.memory_space<vmem>>, vector<1x8x8xf32>
    %49 = vector.shape_cast %48 : vector<1x8x8xf32> to vector<8x8xf32>
    %50 = vector.shape_cast %47 : vector<8x8xf32> to vector<1x8x8xf32>
    tpu.vector_store %arg12[%c0_31, %c0_32, %c0_33], %50 {strides = array<i32>} : memref<3x8x8xf32, #tpu.memory_space<vmem>>, vector<1x8x8xf32>,
    %51 = arith.addf %43, %45 : vector<8x8xf32>
    %c1 = arith.constant 1 : index
    %c0_34 = arith.constant 0 : index
    %c0_35 = arith.constant 0 : index
    %52 = vector.load %arg8[%c1, %c0_34, %c0_35] : memref<3x8x8xf32, #tpu.memory_space<vmem>>, vector<1x8x8xf32>
    %53 = vector.shape_cast %52 : vector<1x8x8xf32> to vector<8x8xf32>
    %54 = arith.mulf %53, %40 : vector<8x8xf32>
    %55 = arith.addf %54, %38 : vector<8x8xf32>
    %c1_36 = arith.constant 1 : index
    %c0_37 = arith.constant 0 : index
    %c0_38 = arith.constant 0 : index
    %56 = vector.load %arg12[%c1_36, %c0_37, %c0_38] : memref<3x8x8xf32, #tpu.memory_space<vmem>>, vector<1x8x8xf32>
    %57 = vector.shape_cast %56 : vector<1x8x8xf32> to vector<8x8xf32>
    %58 = vector.shape_cast %55 : vector<8x8xf32> to vector<1x8x8xf32>
    tpu.vector_store %arg12[%c1_36, %c0_37, %c0_38], %58 {strides = array<i32>} : memref<3x8x8xf32, #tpu.memory_space<vmem>>, vector<1x8x8xf32>,
    %59 = arith.addf %51, %53 : vector<8x8xf32>
    %c2 = arith.constant 2 : index
    %c0_39 = arith.constant 0 : index
    %c0_40 = arith.constant 0 : index
    %60 = vector.load %arg8[%c2, %c0_39, %c0_40] : memref<3x8x8xf32, #tpu.memory_space<vmem>>, vector<1x8x8xf32>
    %61 = vector.shape_cast %60 : vector<1x8x8xf32> to vector<8x8xf32>
    %62 = arith.mulf %61, %40 : vector<8x8xf32>
    %63 = arith.addf %62, %38 : vector<8x8xf32>
    %c2_41 = arith.constant 2 : index
    %c0_42 = arith.constant 0 : index
    %c0_43 = arith.constant 0 : index
    %64 = vector.load %arg12[%c2_41, %c0_42, %c0_43] : memref<3x8x8xf32, #tpu.memory_space<vmem>>, vector<1x8x8xf32>
    %65 = vector.shape_cast %64 : vector<1x8x8xf32> to vector<8x8xf32>
    %66 = vector.shape_cast %63 : vector<8x8xf32> to vector<1x8x8xf32>
    tpu.vector_store %arg12[%c2_41, %c0_42, %c0_43], %66 {strides = array<i32>} : memref<3x8x8xf32, #tpu.memory_space<vmem>>, vector<1x8x8xf32>,
    %67 = arith.addf %59, %61 : vector<8x8xf32>
    %cst_44 = arith.constant 0.333333343 : f32
    %68 = vector.broadcast %cst_44 : f32 to vector<8x8xf32>
    %69 = arith.mulf %67, %68 : vector<8x8xf32>
    %70 = arith.mulf %40, %69 : vector<8x8xf32>
    %71 = arith.addf %38, %70 : vector<8x8xf32>
    %c0_45 = arith.constant 0 : index
    %c0_46 = arith.constant 0 : index
    %72 = vector.load %arg11[%c0_45, %c0_46] : memref<8x8xf32, #tpu.memory_space<vmem>>, vector<8x8xf32>
    tpu.vector_store %arg11[%c0_45, %c0_46], %71 {strides = array<i32>} : memref<8x8xf32, #tpu.memory_space<vmem>>, vector<8x8xf32>,
    return
  }
  func.func @transform_0(%arg0: i32) -> (i32, i32) {
    %c0_i32 = arith.constant 0 : i32
    %c0_i32_0 = arith.constant 0 : i32
    return %arg0, %c0_i32 : i32, i32
  }
  func.func @transform_1(%arg0: i32) -> (i32, i32) {
    %c0_i32 = arith.constant 0 : i32
    %c0_i32_0 = arith.constant 0 : i32
    %c0_i32_1 = arith.constant 0 : i32
    return %c0_i32, %c0_i32_0 : i32, i32
  }
  func.func @transform_2(%arg0: i32) -> (i32, i32) {
    %c0_i32 = arith.constant 0 : i32
    %c0_i32_0 = arith.constant 0 : i32
    %c0_i32_1 = arith.constant 0 : i32
    return %c0_i32, %c0_i32_0 : i32, i32
  }
  func.func @transform_3(%arg0: i32) -> (i32, i32, i32) {
    %c0_i32 = arith.constant 0 : i32
    %c0_i32_0 = arith.constant 0 : i32
    %c0_i32_1 = arith.constant 0 : i32
    %c0_i32_2 = arith.constant 0 : i32
    return %c0_i32, %c0_i32_0, %c0_i32_1 : i32, i32, i32
  }
  func.func @transform_4(%arg0: i32) -> (i32, i32, i32) {
    %c0_i32 = arith.constant 0 : i32
    %c0_i32_0 = arith.constant 0 : i32
    %c0_i32_1 = arith.constant 0 : i32
    %c0_i32_2 = arith.constant 0 : i32
    return %c0_i32, %c0_i32_0, %c0_i32_1 : i32, i32, i32
  }
  func.func @transform_5(%arg0: i32) -> (i32, i32) {
    %c0_i32 = arith.constant 0 : i32
    %c0_i32_0 = arith.constant 0 : i32
    %c0_i32_1 = arith.constant 0 : i32
    return %c0_i32, %c0_i32_0 : i32, i32
  }
  func.func @transform_6(%arg0: i32) -> (i32, i32) {
    %c0_i32 = arith.constant 0 : i32
    %c0_i32_0 = arith.constant 0 : i32
    %c0_i32_1 = arith.constant 0 : i32
    return %c0_i32, %c0_i32_0 : i32, i32
  }
  func.func @transform_7(%arg0: i32) -> (i32, i32, i32) {
    %c0_i32 = arith.constant 0 : i32
    %c0_i32_0 = arith.constant 0 : i32
    %c0_i32_1 = arith.constant 0 : i32
    return %c0_i32, %arg0, %c0_i32_0 : i32, i32, i32
  }
  func.func @transform_8(%arg0: i32) -> (i32, i32) {
    %c0_i32 = arith.constant 0 : i32
    %c0_i32_0 = arith.constant 0 : i32
    return %arg0, %c0_i32 : i32, i32
  }
  func.func @transform_9(%arg0: i32) -> (i32, i32) {
    %c0_i32 = arith.constant 0 : i32
    %c0_i32_0 = arith.constant 0 : i32
    return %arg0, %c0_i32 : i32, i32
  }
  func.func @transform_10(%arg0: i32) -> (i32, i32) {
    %c0_i32 = arith.constant 0 : i32
    %c0_i32_0 = arith.constant 0 : i32
    return %arg0, %c0_i32 : i32, i32
  }
  func.func @transform_11(%arg0: i32) -> (i32, i32, i32) {
    %c0_i32 = arith.constant 0 : i32
    %c0_i32_0 = arith.constant 0 : i32
    %c0_i32_1 = arith.constant 0 : i32
    return %c0_i32, %arg0, %c0_i32_0 : i32, i32, i32
  }
}

</mosaic_0001>

<llo_original>
// kernel: tpu_custom_call.1
$region0: #{tpu_custom_call.1}
  #allocation0 [shape = 'u32[]', space=smem, size = 0x4, offset = 0x4, fixed_abs, tag = 'smem constant byte address 0x4 - core index']
  #allocation1 [shape = 'u32[144,128]{1,0:T(1,128)}', space=vmem, size = 0x12000, scoped, tag = 'internal scratch']
  %s0 = inlined_call_operand.hbm [shape: bf16[16,128], index: 0, kind: input, shape index: {}]
  %s1 = inlined_call_operand.hbm [shape: bf16[128,128], index: 1, kind: input, shape index: {}]
  %s2 = inlined_call_operand.hbm [shape: f32[1,128], index: 2, kind: input, shape index: {}]
  %s3 = inlined_call_operand.hbm [shape: bf16[2,128,128], index: 3, kind: input, shape index: {}]
  %s4 = inlined_call_operand.hbm [shape: f32[2,1,128], index: 4, kind: input, shape index: {}]
  %s5 = inlined_call_operand.hbm [shape: bf16[128,256], index: 5, kind: input, shape index: {}]
  %s6 = inlined_call_operand.hbm [shape: f32[1,256], index: 6, kind: input, shape index: {}]
  %s7 = inlined_call_operand.hbm [shape: f32[3,16,8], index: 7, kind: input, shape index: {}]
  %s8 = inlined_call_operand.hbm [shape: f32[16,8], index: 8, kind: output, shape index: {0}]
  %s9 = inlined_call_operand.hbm [shape: f32[16,8], index: 9, kind: output, shape index: {1}]
  %s10 = inlined_call_operand.hbm [shape: f32[16,8], index: 10, kind: output, shape index: {2}]
  %s11 = inlined_call_operand.hbm [shape: f32[3,16,8], index: 11, kind: output, shape index: {3}]
  %12 = xla_tuple %s8, %s9, %s10, %s11
  %s13 = sld [smem:[#allocation0]]
  $region121: #{tpu_custom_call.1} parent=0
    _
  %s15 = ssub.s32 1, %s13
  %s16 = scalar_select 0, %s15, %s13
  $region1: #{tpu_custom_call.1} parent=0
    #allocation2 [shape = 'u8[4096]{0}', space=vmem, size = 0x1000, scoped, tag = 'input window, operand 0']
    #allocation3 [shape = 's32[2]{0}', space=sflag, size = 0x8, scoped, tag = 'scoped memory for tpu_custom_call.1']
    #allocation4 [shape = 's32[2]{0}', space=sflag, size = 0x8, scoped, tag = 'scoped memory for tpu_custom_call.1']
    #allocation5 [shape = 'u8[32768]{0}', space=vmem, size = 0x8000, scoped, tag = 'input window, operand 1, single buffered']
    #allocation6 [shape = 's32[1]{0}', space=sflag, size = 0x4, scoped, tag = 'scoped memory for tpu_custom_call.1']
    #allocation7 [shape = 'u8[512]{0}', space=vmem, size = 0x400, scoped, tag = 'input window, operand 2, single buffered']
    #allocation8 [shape = 'u8[65536]{0}', space=vmem, size = 0x10000, scoped, tag = 'input window, operand 3, single buffered']
    #allocation9 [shape = 's32[1]{0}', space=sflag, size = 0x4, scoped, tag = 'scoped memory for tpu_custom_call.1']
    #allocation10 [shape = 'u8[1024]{0}', space=vmem, size = 0x400, scoped, tag = 'input window, operand 4, single buffered']
    #allocation11 [shape = 'u8[65536]{0}', space=vmem, size = 0x10000, scoped, tag = 'input window, operand 5, single buffered']
    #allocation12 [shape = 's32[1]{0}', space=sflag, size = 0x4, scoped, tag = 'scoped memory for tpu_custom_call.1']
    #allocation13 [shape = 'u8[1024]{0}', space=vmem, size = 0x400, scoped, tag = 'input window, operand 6, single buffered']
    #allocation14 [shape = 'u8[24576]{0}', space=vmem, size = 0x6000, scoped, tag = 'input window, operand 7']
    #allocation15 [shape = 's32[2]{0}', space=sflag, size = 0x8, scoped, tag = 'scoped memory for tpu_custom_call.1']
    #allocation16 [shape = 'u8[8192]{0}', space=vmem, size = 0x2000, scoped, tag = 'output window, operand 0']
    #allocation17 [shape = 'u8[8192]{0}', space=vmem, size = 0x2000, scoped, tag = 'output window, operand 1']
    #allocation18 [shape = 's32[2]{0}', space=sflag, size = 0x8, scoped, tag = 'scoped memory for tpu_custom_call.1']
    #allocation19 [shape = 'u8[8192]{0}', space=vmem, size = 0x2000, scoped, tag = 'output window, operand 2']
    #allocation20 [shape = 'u8[24576]{0}', space=vmem, size = 0x6000, scoped, tag = 'output window, operand 3']
    #allocation21 [shape = 's32[2]{0}', space=sflag, size = 0x8, scoped, tag = 'scoped memory for tpu_custom_call.1']
    %17 = vsyncpa [#allocation3], 0
    %s18 = scalar_lea.sflag [#allocation3], 1
    %19 = vsyncpa %s18, 0
    %20 = vsyncpa [#allocation6], 0
    %21 = vsyncpa [#allocation9], 0
    %22 = vsyncpa [#allocation12], 0
    %23 = vsyncpa [#allocation15], 0
    %s24 = scalar_lea.sflag [#allocation15], 1
    %25 = vsyncpa %s24, 0
    %26 = vsyncpa [#allocation4], 0
    %s27 = scalar_lea.sflag [#allocation4], 1
    %28 = vsyncpa %s27, 0
    %29 = vsyncpa [#allocation18], 0
    %s30 = scalar_lea.sflag [#allocation18], 1
    %31 = vsyncpa %s30, 0
    %32 = vsyncpa [#allocation21], 0
    %s33 = scalar_lea.sflag [#allocation21], 1
    %34 = vsyncpa %s33, 0
    loop: start=0, step=1, limit=4
    $region2: #{tpu_custom_call.1} parent=1 // loop_pre_header
      _
    $region3: #{tpu_custom_call.1} parent=1 // loop_header
      %s36 = sphi 0, %s40
      %p37 = scmp.ge.s32.totalorder %s36, 4
      %s46 = sphi 0, %s48
      %s49 = sphi 0, %s46
      %s50 = sphi 0, %s49
      %s66 = sphi 0, %s50
      %s70 = sphi 0, %s70
      %s72 = sphi 0, %s70
      %s73 = sphi 0, %s72
      %s87 = sphi 0, %s73
      %s91 = sphi 0, %s91
      %s93 = sphi 0, %s91
      %s94 = sphi 0, %s93
      %s108 = sphi 0, %s94
      %s112 = sphi 0, %s112
      %s114 = sphi 0, %s112
      %s115 = sphi 0, %s114
      %s129 = sphi 0, %s115
      %s133 = sphi 0, %s133
      %s135 = sphi 0, %s133
      %s136 = sphi 0, %s135
      %s150 = sphi 0, %s136
      %s154 = sphi 0, %s154
      %s156 = sphi 0, %s154
      %s157 = sphi 0, %s156
      %s171 = sphi 0, %s157
      %s175 = sphi 0, %s175
      %s177 = sphi 0, %s175
      %s178 = sphi 0, %s177
      %s192 = sphi 0, %s178
      %s198 = sphi 0, %s200
      %s201 = sphi 0, %s198
      %s202 = sphi 0, %s201
      %s218 = sphi 0, %s202
      %s224 = sphi 0, %s226
      %s227 = sphi 0, %s224
      %s228 = sphi 0, %s227
      %s244 = sphi 0, %s228
      %s250 = sphi 0, %s252
      %s253 = sphi 0, %s250
      %s254 = sphi 0, %s253
      %s270 = sphi 0, %s254
      %s276 = sphi 0, %s278
      %s279 = sphi 0, %s276
      %s280 = sphi 0, %s279
      %s296 = sphi 0, %s280
      %s302 = sphi 0, %s304
      %s305 = sphi 0, %s302
      %s306 = sphi 0, %s305
      %s322 = sphi 0, %s306
    $region4: #{tpu_custom_call.1} parent=1 // loop_header_branch
      %39 = sbr.rel (%p37) target = $region8
    $region5: #{tpu_custom_call.1} parent=1 // loop_body
      %s41 = ssub.s32 %s36, 1
      %s42 = ssub.s32 %s36, 2
      %s43 = sadd.s32 %s36, 1
      %s44 = ssub.s32 %s36, %s43
      %p45 = scmp.eq.s32.totalorder %s44, 0
      %s47 = sadd.s32 %s46, 1
      %s48 = scalar_select %p45, %s46, %s47
      %p51 = pneg %p45
      %p52 = scmp.eq.s32.totalorder %s36, 1
      %p53 = por %p51, %p52
      %p54 = scmp.ne.s32.totalorder %s46, %s49
      %p55 = scmp.eq.s32.totalorder %s36, 0
      %p56 = por %p54, %p55
      %p57 = scmp.ne.s32.totalorder %s46, %s49
      %p58 = scmp.eq.s32.totalorder %s41, 1
      %p59 = por %p57, %p58
      %p60 = scmp.ne.s32.totalorder %s49, %s50
      %p61 = scmp.eq.s32.totalorder %s41, 0
      %p62 = por %p60, %p61
      %p63 = scmp.ne.s32.totalorder %s49, %s50
      %p64 = scmp.eq.s32.totalorder %s42, 1
      %p65 = por %p63, %p64
      %p67 = scmp.ne.s32.totalorder %s50, %s66
      %p68 = scmp.eq.s32.totalorder %s42, 0
      %p69 = por %p67, %p68
      %s71 = sadd.s32 %s70, 1
      %p74 = scmp.eq.s32.totalorder %s36, 1
      %p75 = scmp.ne.s32.totalorder %s70, %s72
      %p76 = scmp.eq.s32.totalorder %s36, 0
      %p77 = por %p75, %p76
      %p78 = scmp.ne.s32.totalorder %s70, %s72
      %p79 = scmp.eq.s32.totalorder %s41, 1
      %p80 = por %p78, %p79
      %p81 = scmp.ne.s32.totalorder %s72, %s73
      %p82 = scmp.eq.s32.totalorder %s41, 0
      %p83 = por %p81, %p82
      %p84 = scmp.ne.s32.totalorder %s72, %s73
      %p85 = scmp.eq.s32.totalorder %s42, 1
      %p86 = por %p84, %p85
      %p88 = scmp.ne.s32.totalorder %s73, %s87
      %p89 = scmp.eq.s32.totalorder %s42, 0
      %p90 = por %p88, %p89
      %s92 = sadd.s32 %s91, 1
      %p95 = scmp.eq.s32.totalorder %s36, 1
      %p96 = scmp.ne.s32.totalorder %s91, %s93
      %p97 = scmp.eq.s32.totalorder %s36, 0
      %p98 = por %p96, %p97
      %p99 = scmp.ne.s32.totalorder %s91, %s93
      %p100 = scmp.eq.s32.totalorder %s41, 1
      %p101 = por %p99, %p100
      %p102 = scmp.ne.s32.totalorder %s93, %s94
      %p103 = scmp.eq.s32.totalorder %s41, 0
      %p104 = por %p102, %p103
      %p105 = scmp.ne.s32.totalorder %s93, %s94
      %p106 = scmp.eq.s32.totalorder %s42, 1
      %p107 = por %p105, %p106
      %p109 = scmp.ne.s32.totalorder %s94, %s108
      %p110 = scmp.eq.s32.totalorder %s42, 0
      %p111 = por %p109, %p110
      %s113 = sadd.s32 %s112, 1
      %p116 = scmp.eq.s32.totalorder %s36, 1
      %p117 = scmp.ne.s32.totalorder %s112, %s114
      %p118 = scmp.eq.s32.totalorder %s36, 0
      %p119 = por %p117, %p118
      %p120 = scmp.ne.s32.totalorder %s112, %s114
      %p121 = scmp.eq.s32.totalorder %s41, 1
      %p122 = por %p120, %p121
      %p123 = scmp.ne.s32.totalorder %s114, %s115
      %p124 = scmp.eq.s32.totalorder %s41, 0
      %p125 = por %p123, %p124
      %p126 = scmp.ne.s32.totalorder %s114, %s115
      %p127 = scmp.eq.s32.totalorder %s42, 1
      %p128 = por %p126, %p127
      %p130 = scmp.ne.s32.totalorder %s115, %s129
      %p131 = scmp.eq.s32.totalorder %s42, 0
      %p132 = por %p130, %p131
      %s134 = sadd.s32 %s133, 1
      %p137 = scmp.eq.s32.totalorder %s36, 1
      %p138 = scmp.ne.s32.totalorder %s133, %s135
      %p139 = scmp.eq.s32.totalorder %s36, 0
      %p140 = por %p138, %p139
      %p141 = scmp.ne.s32.totalorder %s133, %s135
      %p142 = scmp.eq.s32.totalorder %s41, 1
      %p143 = por %p141, %p142
      %p144 = scmp.ne.s32.totalorder %s135, %s136
      %p145 = scmp.eq.s32.totalorder %s41, 0
      %p146 = por %p144, %p145
      %p147 = scmp.ne.s32.totalorder %s135, %s136
      %p148 = scmp.eq.s32.totalorder %s42, 1
      %p149 = por %p147, %p148
      %p151 = scmp.ne.s32.totalorder %s136, %s150
      %p152 = scmp.eq.s32.totalorder %s42, 0
      %p153 = por %p151, %p152
      %s155 = sadd.s32 %s154, 1
      %p158 = scmp.eq.s32.totalorder %s36, 1
      %p159 = scmp.ne.s32.totalorder %s154, %s156
      %p160 = scmp.eq.s32.totalorder %s36, 0
      %p161 = por %p159, %p160
      %p162 = scmp.ne.s32.totalorder %s154, %s156
      %p163 = scmp.eq.s32.totalorder %s41, 1
      %p164 = por %p162, %p163
      %p165 = scmp.ne.s32.totalorder %s156, %s157
      %p166 = scmp.eq.s32.totalorder %s41, 0
      %p167 = por %p165, %p166
      %p168 = scmp.ne.s32.totalorder %s156, %s157
      %p169 = scmp.eq.s32.totalorder %s42, 1
      %p170 = por %p168, %p169
      %p172 = scmp.ne.s32.totalorder %s157, %s171
      %p173 = scmp.eq.s32.totalorder %s42, 0
      %p174 = por %p172, %p173
      %s176 = sadd.s32 %s175, 1
      %p179 = scmp.eq.s32.totalorder %s36, 1
      %p180 = scmp.ne.s32.totalorder %s175, %s177
      %p181 = scmp.eq.s32.totalorder %s36, 0
      %p182 = por %p180, %p181
      %p183 = scmp.ne.s32.totalorder %s175, %s177
      %p184 = scmp.eq.s32.totalorder %s41, 1
      %p185 = por %p183, %p184
      %p186 = scmp.ne.s32.totalorder %s177, %s178
      %p187 = scmp.eq.s32.totalorder %s41, 0
      %p188 = por %p186, %p187
      %p189 = scmp.ne.s32.totalorder %s177, %s178
      %p190 = scmp.eq.s32.totalorder %s42, 1
      %p191 = por %p189, %p190
      %p193 = scmp.ne.s32.totalorder %s178, %s192
      %p194 = scmp.eq.s32.totalorder %s42, 0
      %p195 = por %p193, %p194
      %s196 = ssub.s32 %s36, %s43
      %p197 = scmp.eq.s32.totalorder %s196, 0
      %s199 = sadd.s32 %s198, 1
      %s200 = scalar_select %p197, %s198, %s199
      %p203 = pneg %p197
      %p204 = scmp.eq.s32.totalorder %s36, 1
      %p205 = por %p203, %p204
      %p206 = scmp.ne.s32.totalorder %s198, %s201
      %p207 = scmp.eq.s32.totalorder %s36, 0
      %p208 = por %p206, %p207
      %p209 = scmp.ne.s32.totalorder %s198, %s201
      %p210 = scmp.eq.s32.totalorder %s41, 1
      %p211 = por %p209, %p210
      %p212 = scmp.ne.s32.totalorder %s201, %s202
      %p213 = scmp.eq.s32.totalorder %s41, 0
      %p214 = por %p212, %p213
      %p215 = scmp.ne.s32.totalorder %s201, %s202
      %p216 = scmp.eq.s32.totalorder %s42, 1
      %p217 = por %p215, %p216
      %p219 = scmp.ne.s32.totalorder %s202, %s218
      %p220 = scmp.eq.s32.totalorder %s42, 0
      %p221 = por %p219, %p220
      %s222 = ssub.s32 %s36, %s43
      %p223 = scmp.eq.s32.totalorder %s222, 0
      %s225 = sadd.s32 %s224, 1
      %s226 = scalar_select %p223, %s224, %s225
      %p229 = pneg %p223
      %p230 = scmp.eq.s32.totalorder %s36, 1
      %p231 = por %p229, %p230
      %p232 = scmp.ne.s32.totalorder %s224, %s227
      %p233 = scmp.eq.s32.totalorder %s36, 0
      %p234 = por %p232, %p233
      %p235 = scmp.ne.s32.totalorder %s224, %s227
      %p236 = scmp.eq.s32.totalorder %s41, 1
      %p237 = por %p235, %p236
      %p238 = scmp.ne.s32.totalorder %s227, %s228
      %p239 = scmp.eq.s32.totalorder %s41, 0
      %p240 = por %p238, %p239
      %p241 = scmp.ne.s32.totalorder %s227, %s228
      %p242 = scmp.eq.s32.totalorder %s42, 1
      %p243 = por %p241, %p242
      %p245 = scmp.ne.s32.totalorder %s228, %s244
      %p246 = scmp.eq.s32.totalorder %s42, 0
      %p247 = por %p245, %p246
      %s248 = ssub.s32 %s36, %s43
      %p249 = scmp.eq.s32.totalorder %s248, 0
      %s251 = sadd.s32 %s250, 1
      %s252 = scalar_select %p249, %s250, %s251
      %p255 = pneg %p249
      %p256 = scmp.eq.s32.totalorder %s36, 1
      %p257 = por %p255, %p256
      %p258 = scmp.ne.s32.totalorder %s250, %s253
      %p259 = scmp.eq.s32.totalorder %s36, 0
      %p260 = por %p258, %p259
      %p261 = scmp.ne.s32.totalorder %s250, %s253
      %p262 = scmp.eq.s32.totalorder %s41, 1
      %p263 = por %p261, %p262
      %p264 = scmp.ne.s32.totalorder %s253, %s254
      %p265 = scmp.eq.s32.totalorder %s41, 0
      %p266 = por %p264, %p265
      %p267 = scmp.ne.s32.totalorder %s253, %s254
      %p268 = scmp.eq.s32.totalorder %s42, 1
      %p269 = por %p267, %p268
      %p271 = scmp.ne.s32.totalorder %s254, %s270
      %p272 = scmp.eq.s32.totalorder %s42, 0
      %p273 = por %p271, %p272
      %s274 = ssub.s32 %s36, %s43
      %p275 = scmp.eq.s32.totalorder %s274, 0
      %s277 = sadd.s32 %s276, 1
      %s278 = scalar_select %p275, %s276, %s277
      %p281 = pneg %p275
      %p282 = scmp.eq.s32.totalorder %s36, 1
      %p283 = por %p281, %p282
      %p284 = scmp.ne.s32.totalorder %s276, %s279
      %p285 = scmp.eq.s32.totalorder %s36, 0
      %p286 = por %p284, %p285
      %p287 = scmp.ne.s32.totalorder %s276, %s279
      %p288 = scmp.eq.s32.totalorder %s41, 1
      %p289 = por %p287, %p288
      %p290 = scmp.ne.s32.totalorder %s279, %s280
      %p291 = scmp.eq.s32.totalorder %s41, 0
      %p292 = por %p290, %p291
      %p293 = scmp.ne.s32.totalorder %s279, %s280
      %p294 = scmp.eq.s32.totalorder %s42, 1
      %p295 = por %p293, %p294
      %p297 = scmp.ne.s32.totalorder %s280, %s296
      %p298 = scmp.eq.s32.totalorder %s42, 0
      %p299 = por %p297, %p298
      %s300 = ssub.s32 %s36, %s43
      %p301 = scmp.eq.s32.totalorder %s300, 0
      %s303 = sadd.s32 %s302, 1
      %s304 = scalar_select %p301, %s302, %s303
      %p307 = pneg %p301
      %p308 = scmp.eq.s32.totalorder %s36, 1
      %p309 = por %p307, %p308
      %p310 = scmp.ne.s32.totalorder %s302, %s305
      %p311 = scmp.eq.s32.totalorder %s36, 0
      %p312 = por %p310, %p311
      %p313 = scmp.ne.s32.totalorder %s302, %s305
      %p314 = scmp.eq.s32.totalorder %s41, 1
      %p315 = por %p313, %p314
      %p316 = scmp.ne.s32.totalorder %s305, %s306
      %p317 = scmp.eq.s32.totalorder %s41, 0
      %p318 = por %p316, %p317
      %p319 = scmp.ne.s32.totalorder %s305, %s306
      %p320 = scmp.eq.s32.totalorder %s42, 1
      %p321 = por %p319, %p320
      %p323 = scmp.ne.s32.totalorder %s306, %s322
      %p324 = scmp.eq.s32.totalorder %s42, 0
      %p325 = por %p323, %p324
      %p326 = scmp.le.s32.totalorder 1, %s36
      %p327 = scmp.lt.s32.totalorder %s36, 3
      %p328 = pnand %p326, %p327
      %p329 = pneg %p328
      // Predicated region
      $region9: #{tpu_custom_call.1} parent=5 // pred_check
        _
      $region10: #{tpu_custom_call.1} parent=5 // pred_check_branch
        %331 = sbr.rel (%p328) target = $region12
      $region11: #{tpu_custom_call.1} parent=5 // pred_region
        %s332 = ssub.s32 %s36, 1
        // Predicated region
        $region13: #{tpu_custom_call.1} parent=11 // pred_check
          %p333 = pneg %p83
        $region14: #{tpu_custom_call.1} parent=11 // pred_check_branch
          %335 = sbr.rel (%p333) target = $region16
        $region15: #{tpu_custom_call.1} parent=11 // pred_region
          %s337 = ssub.s32 1024, 1024
          %338 = vsyncadd [#allocation6], %s337
          %s339 = sshll.u32 [#allocation5], 4
          %s340 = int_to_ptr.vmem [resolvable:$true] %s339
          %345 = dma.hbm_to_vmem [thread:$0]  %s1, 1024, %s340, [#allocation6], 64, 64, 4
        $region16: #{tpu_custom_call.1} parent=11 // pred_fallthru
          _
        // Predicated region
        $region17: #{tpu_custom_call.1} parent=11 // pred_check
          %p346 = pneg %p104
        $region18: #{tpu_custom_call.1} parent=11 // pred_check_branch
          %348 = sbr.rel (%p346) target = $region20
        $region19: #{tpu_custom_call.1} parent=11 // pred_region
          %s350 = ssub.s32 16, 16
          %351 = vsyncadd [#allocation6], %s350
          %s353 = sshll.u32 [#allocation7], 4
          %s354 = int_to_ptr.vmem [resolvable:$true] %s353
          %356 = dma.hbm_to_vmem [thread:$0]  %s2, 16, %s354, [#allocation6]
        $region20: #{tpu_custom_call.1} parent=11 // pred_fallthru
          _
        // Predicated region
        $region21: #{tpu_custom_call.1} parent=11 // pred_check
          %p357 = pneg %p125
        $region22: #{tpu_custom_call.1} parent=11 // pred_check_branch
          %359 = sbr.rel (%p357) target = $region24
        $region23: #{tpu_custom_call.1} parent=11 // pred_region
          %s361 = ssub.s32 2048, 2048
          %362 = vsyncadd [#allocation9], %s361
          %s363 = sshll.u32 [#allocation8], 4
          %s364 = int_to_ptr.vmem [resolvable:$true] %s363
          %369 = dma.hbm_to_vmem [thread:$0]  %s3, 2048, %s364, [#allocation9], 64, 64, 4
        $region24: #{tpu_custom_call.1} parent=11 // pred_fallthru
          _
        // Predicated region
        $region25: #{tpu_custom_call.1} parent=11 // pred_check
          %p370 = pneg %p146
        $region26: #{tpu_custom_call.1} parent=11 // pred_check_branch
          %372 = sbr.rel (%p370) target = $region28
        $region27: #{tpu_custom_call.1} parent=11 // pred_region
          %s374 = ssub.s32 32, 32
          %375 = vsyncadd [#allocation9], %s374
          %s376 = sshll.u32 [#allocation10], 4
          %s377 = int_to_ptr.vmem [resolvable:$true] %s376
          %382 = dma.hbm_to_vmem [thread:$0]  %s4, 32, %s377, [#allocation9], 16, 16, 1
        $region28: #{tpu_custom_call.1} parent=11 // pred_fallthru
          _
        // Predicated region
        $region29: #{tpu_custom_call.1} parent=11 // pred_check
          %p383 = pneg %p167
        $region30: #{tpu_custom_call.1} parent=11 // pred_check_branch
          %385 = sbr.rel (%p383) target = $region32
        $region31: #{tpu_custom_call.1} parent=11 // pred_region
          %s387 = ssub.s32 2048, 2048
          %388 = vsyncadd [#allocation12], %s387
          %s389 = sshll.u32 [#allocation11], 4
          %s390 = int_to_ptr.vmem [resolvable:$true] %s389
          %395 = dma.hbm_to_vmem [thread:$0]  %s5, 2048, %s390, [#allocation12], 128, 128, 8
        $region32: #{tpu_custom_call.1} parent=11 // pred_fallthru
          _
        // Predicated region
        $region33: #{tpu_custom_call.1} parent=11 // pred_check
          %p396 = pneg %p188
        $region34: #{tpu_custom_call.1} parent=11 // pred_check_branch
          %398 = sbr.rel (%p396) target = $region36
        $region35: #{tpu_custom_call.1} parent=11 // pred_region
          %s400 = ssub.s32 32, 32
          %401 = vsyncadd [#allocation12], %s400
          %s403 = sshll.u32 [#allocation13], 4
          %s404 = int_to_ptr.vmem [resolvable:$true] %s403
          %406 = dma.hbm_to_vmem [thread:$0]  %s6, 32, %s404, [#allocation12]
        $region36: #{tpu_custom_call.1} parent=11 // pred_fallthru
          _
      $region12: #{tpu_custom_call.1} parent=5 // pred_fallthru
        _
      %p407 = scmp.lt.s32.totalorder %s36, 2
      // Predicated region
      $region37: #{tpu_custom_call.1} parent=5 // pred_check
        %p408 = pneg %p407
      $region38: #{tpu_custom_call.1} parent=5 // pred_check_branch
        %410 = sbr.rel (%p408) target = $region40
      $region39: #{tpu_custom_call.1} parent=5 // pred_region
        // Predicated region
        $region41: #{tpu_custom_call.1} parent=39 // pred_check
          %p411 = pneg %p56
        $region42: #{tpu_custom_call.1} parent=39 // pred_check_branch
          %413 = sbr.rel (%p411) target = $region44
        $region43: #{tpu_custom_call.1} parent=39 // pred_region
          %s414 = sand.u32 %s46, 1
          %s415 = scalar_lea.sflag [#allocation3], %s414
          %s416 = sand.u32 %s46, 1
          %s417 = smul.addr %s416, 4
          %s418 = scalar_lea.vmem [#allocation2], %s417
          %s420 = ssub.s32 64, 64
          %421 = vsyncadd %s415, %s420
          %s422 = smul.addr %s36, 64
          %s423 = scalar_lea.hbm %s0, %s422
          %s425 = sshll.u32 %s418, 4
          %s426 = int_to_ptr.vmem [resolvable:$true] %s425
          %428 = dma.hbm_to_vmem [thread:$0]  %s423, 64, %s426, %s415
        $region44: #{tpu_custom_call.1} parent=39 // pred_fallthru
          _
        // Predicated region
        $region45: #{tpu_custom_call.1} parent=39 // pred_check
          %p429 = pneg %p208
        $region46: #{tpu_custom_call.1} parent=39 // pred_check_branch
          %431 = sbr.rel (%p429) target = $region48
        $region47: #{tpu_custom_call.1} parent=39 // pred_region
          %s432 = sand.u32 %s198, 1
          %s433 = scalar_lea.sflag [#allocation15], %s432
          %s434 = sand.u32 %s198, 1
          %s435 = smul.addr %s434, 24
          %s436 = scalar_lea.vmem [#allocation14], %s435
          %s438 = ssub.s32 384, 384
          %439 = vsyncadd %s433, %s438
          %s440 = smul.addr %s36, 128
          %s441 = scalar_lea.hbm %s7, %s440
          %s442 = sshll.u32 %s436, 4
          %s443 = int_to_ptr.vmem [resolvable:$true] %s442
          %448 = dma.hbm_to_vmem [thread:$0]  %s441, 384, %s443, %s433, 256, 128, 8
        $region48: #{tpu_custom_call.1} parent=39 // pred_fallthru
          _
      $region40: #{tpu_custom_call.1} parent=5 // pred_fallthru
        _
      %p449 = scmp.le.s32.totalorder 1, %s36
      %p450 = scmp.lt.s32.totalorder %s36, 3
      %p451 = pnand %p449, %p450
      %p452 = pneg %p451
      // Predicated region
      $region49: #{tpu_custom_call.1} parent=5 // pred_check
        _
      $region50: #{tpu_custom_call.1} parent=5 // pred_check_branch
        %454 = sbr.rel (%p451) target = $region52
      $region51: #{tpu_custom_call.1} parent=5 // pred_region
        %s455 = ssub.s32 %s36, 1
        %s456 = sand.u32 %s49, 1
        %s457 = scalar_lea.sflag [#allocation3], %s456
        %s458 = sand.u32 %s49, 1
        %s459 = smul.addr %s458, 4
        %s460 = scalar_lea.vmem [#allocation2], %s459
        // Predicated region
        $region53: #{tpu_custom_call.1} parent=51 // pred_check
          %p461 = pneg %p62
        $region54: #{tpu_custom_call.1} parent=51 // pred_check_branch
          %463 = sbr.rel (%p461) target = $region56
        $region55: #{tpu_custom_call.1} parent=51 // pred_region
          %464 = dma.done %s457, 64
        $region56: #{tpu_custom_call.1} parent=51 // pred_fallthru
          _
        // Predicated region
        $region57: #{tpu_custom_call.1} parent=51 // pred_check
          %p465 = pneg %p83
        $region58: #{tpu_custom_call.1} parent=51 // pred_check_branch
          %467 = sbr.rel (%p465) target = $region60
        $region59: #{tpu_custom_call.1} parent=51 // pred_region
          %468 = dma.done [#allocation6], 1024
        $region60: #{tpu_custom_call.1} parent=51 // pred_fallthru
          _
        // Predicated region
        $region61: #{tpu_custom_call.1} parent=51 // pred_check
          %p469 = pneg %p104
        $region62: #{tpu_custom_call.1} parent=51 // pred_check_branch
          %471 = sbr.rel (%p469) target = $region64
        $region63: #{tpu_custom_call.1} parent=51 // pred_region
          %472 = dma.done [#allocation6], 16
        $region64: #{tpu_custom_call.1} parent=51 // pred_fallthru
          _
        // Predicated region
        $region65: #{tpu_custom_call.1} parent=51 // pred_check
          %p473 = pneg %p125
        $region66: #{tpu_custom_call.1} parent=51 // pred_check_branch
          %475 = sbr.rel (%p473) target = $region68
        $region67: #{tpu_custom_call.1} parent=51 // pred_region
          %476 = dma.done [#allocation9], 2048
        $region68: #{tpu_custom_call.1} parent=51 // pred_fallthru
          _
        // Predicated region
        $region69: #{tpu_custom_call.1} parent=51 // pred_check
          %p477 = pneg %p146
        $region70: #{tpu_custom_call.1} parent=51 // pred_check_branch
          %479 = sbr.rel (%p477) target = $region72
        $region71: #{tpu_custom_call.1} parent=51 // pred_region
          %480 = dma.done [#allocation9], 32
        $region72: #{tpu_custom_call.1} parent=51 // pred_fallthru
          _
        // Predicated region
        $region73: #{tpu_custom_call.1} parent=51 // pred_check
          %p481 = pneg %p167
        $region74: #{tpu_custom_call.1} parent=51 // pred_check_branch
          %483 = sbr.rel (%p481) target = $region76
        $region75: #{tpu_custom_call.1} parent=51 // pred_region
          %484 = dma.done [#allocation12], 2048
        $region76: #{tpu_custom_call.1} parent=51 // pred_fallthru
          _
        // Predicated region
        $region77: #{tpu_custom_call.1} parent=51 // pred_check
          %p485 = pneg %p188
        $region78: #{tpu_custom_call.1} parent=51 // pred_check_branch
          %487 = sbr.rel (%p485) target = $region80
        $region79: #{tpu_custom_call.1} parent=51 // pred_region
          %488 = dma.done [#allocation12], 32
        $region80: #{tpu_custom_call.1} parent=51 // pred_fallthru
          _
        %s489 = sand.u32 %s201, 1
        %s490 = scalar_lea.sflag [#allocation15], %s489
        %s491 = sand.u32 %s201, 1
        %s492 = smul.addr %s491, 24
        %s493 = scalar_lea.vmem [#allocation14], %s492
        // Predicated region
        $region81: #{tpu_custom_call.1} parent=51 // pred_check
          %p494 = pneg %p214
        $region82: #{tpu_custom_call.1} parent=51 // pred_check_branch
          %496 = sbr.rel (%p494) target = $region84
        $region83: #{tpu_custom_call.1} parent=51 // pred_region
          %497 = dma.done %s490, 384
        $region84: #{tpu_custom_call.1} parent=51 // pred_fallthru
          _
        %s498 = sand.u32 %s49, 1
        %s499 = scalar_lea.sflag [#allocation3], %s498
        %s500 = sand.u32 %s49, 1
        %s501 = smul.addr %s500, 4
        %s502 = scalar_lea.vmem [#allocation2], %s501
        %p503 = pneg %p62
        %p504 = pneg %p59
        %p505 = pneg %p83
        %p506 = pneg %p80
        %p507 = pneg %p104
        %p508 = pneg %p101
        %p509 = pneg %p125
        %p510 = pneg %p122
        %p511 = pneg %p146
        %p512 = pneg %p143
        %p513 = pneg %p167
        %p514 = pneg %p164
        %p515 = pneg %p188
        %p516 = pneg %p185
        %s517 = sand.u32 %s201, 1
        %s518 = scalar_lea.sflag [#allocation15], %s517
        %s519 = sand.u32 %s201, 1
        %s520 = smul.addr %s519, 24
        %s521 = scalar_lea.vmem [#allocation14], %s520
        %p522 = pneg %p214
        %p523 = pneg %p211
        %p524 = pneg %p240
        %p525 = pneg %p237
        %s526 = sand.u32 %s227, 1
        %s527 = scalar_lea.sflag [#allocation4], %s526
        %s528 = sand.u32 %s227, 1
        %s529 = smul.addr %s528, 8
        %s530 = scalar_lea.vmem [#allocation16], %s529
        %p531 = pneg %p266
        %p532 = pneg %p263
        %s533 = sand.u32 %s41, 1
        %s534 = scalar_lea.sflag [#allocation18], %s533
        %s535 = sand.u32 %s253, 1
        %s536 = smul.addr %s535, 8
        %s537 = scalar_lea.vmem [#allocation17], %s536
        %p538 = pneg %p292
        %p539 = pneg %p289
        %s540 = sand.u32 %s41, 1
        %s541 = scalar_lea.sflag [#allocation18], %s540
        %s542 = sand.u32 %s279, 1
        %s543 = smul.addr %s542, 8
        %s544 = scalar_lea.vmem [#allocation19], %s543
        %p545 = pneg %p318
        %p546 = pneg %p315
        %s547 = sand.u32 %s305, 1
        %s548 = scalar_lea.sflag [#allocation21], %s547
        %s549 = sand.u32 %s305, 1
        %s550 = smul.addr %s549, 24
        %s551 = scalar_lea.vmem [#allocation20], %s550
        %v553 = vld [vmem:[%s460] sm:$0xf]
        %v554 = vld [vmem:[#allocation5] sm:$0xf]
        %v555 = vld [vmem:[#allocation5 + $0x4] sm:$0xf]
        %v556 = vld [vmem:[#allocation5 + $0x8] sm:$0xf]
        %v557 = vld [vmem:[#allocation5 + $0xc] sm:$0xf]
        %v558 = vld [vmem:[#allocation5 + $0x10] sm:$0xf]
        %v559 = vld [vmem:[#allocation5 + $0x14] sm:$0xf]
        %v560 = vld [vmem:[#allocation5 + $0x18] sm:$0xf]
        %v561 = vld [vmem:[#allocation5 + $0x1c] sm:$0xf]
        %v562 = vld [vmem:[#allocation5 + $0x20] sm:$0xf]
        %v563 = vld [vmem:[#allocation5 + $0x24] sm:$0xf]
        %v564 = vld [vmem:[#allocation5 + $0x28] sm:$0xf]
        %v565 = vld [vmem:[#allocation5 + $0x2c] sm:$0xf]
        %v566 = vld [vmem:[#allocation5 + $0x30] sm:$0xf]
        %v567 = vld [vmem:[#allocation5 + $0x34] sm:$0xf]
        %v568 = vld [vmem:[#allocation5 + $0x38] sm:$0xf]
        %v569 = vld [vmem:[#allocation5 + $0x3c] sm:$0xf]
        %v570 = vld [vmem:[#allocation7] sm:$0x1]
        %v572 = vlaneseq
        %v573 = vshrl.u32 %v572, 7
        %v574 = vsub.s32 0, %v573
        %v575 = vrot.slane %v570, %v574
        %v593 = vunpack.c.l.b16 %v554
        %v594 = vunpack.c.l.b16 %v555
        %v595 = vunpack.c.l.b16 %v556
        %v596 = vunpack.c.l.b16 %v557
        %v597 = vunpack.c.l.b16 %v558
        %v598 = vunpack.c.l.b16 %v559
        %v599 = vunpack.c.l.b16 %v560
        %v600 = vunpack.c.l.b16 %v561
        %v601 = vunpack.c.l.b16 %v562
        %v602 = vunpack.c.l.b16 %v563
        %v603 = vunpack.c.l.b16 %v564
        %v604 = vunpack.c.l.b16 %v565
        %v605 = vunpack.c.l.b16 %v566
        %v606 = vunpack.c.l.b16 %v567
        %v607 = vunpack.c.l.b16 %v568
        %v608 = vunpack.c.l.b16 %v569
        %v609 = vpack.c.b16 %v594, %v593
        %v610 = vpack.c.b16 %v596, %v595
        %v611 = vpack.c.b16 %v598, %v597
        %v612 = vpack.c.b16 %v600, %v599
        %v613 = vpack.c.b16 %v602, %v601
        %v614 = vpack.c.b16 %v604, %v603
        %v615 = vpack.c.b16 %v606, %v605
        %v616 = vpack.c.b16 %v608, %v607
        %625 = vmatprep.subr.bf16.mxu0 0
        %626 = vmatpush1.bf16.msra.mxu0 %v609
        %627 = vmatprep.subr.bf16.mxu0 0
        %628 = vmatpush1.bf16.msra.mxu0 %v610
        %629 = vmatprep.subr.bf16.mxu0 0
        %630 = vmatpush1.bf16.msra.mxu0 %v611
        %631 = vmatprep.subr.bf16.mxu0 0
        %632 = vmatpush1.bf16.msra.mxu0 %v612
        %633 = vmatprep.subr.bf16.mxu0 0
        %634 = vmatpush1.bf16.msra.mxu0 %v613
        %635 = vmatprep.subr.bf16.mxu0 0
        %636 = vmatpush1.bf16.msra.mxu0 %v614
        %637 = vmatprep.subr.bf16.mxu0 0
        %638 = vmatpush1.bf16.msra.mxu0 %v615
        %639 = vmatprep.subr.bf16.mxu0 0
        %640 = vmatpush1.bf16.msra.mxu0 %v616
        %641 = vmatprep.subr.bf16.mxu0 0
        %642 = vmatpush1.bf16.msra.mxu0 0
        %643 = vmatprep.subr.bf16.mxu0 0
        %644 = vmatpush1.bf16.msra.mxu0 0
        %645 = vmatprep.subr.bf16.mxu0 0
        %646 = vmatpush1.bf16.msra.mxu0 0
        %647 = vmatprep.subr.bf16.mxu0 0
        %648 = vmatpush1.bf16.msra.mxu0 0
        %649 = vmatprep.subr.bf16.mxu0 0
        %650 = vmatpush1.bf16.msra.mxu0 0
        %651 = vmatprep.subr.bf16.mxu0 0
        %652 = vmatpush1.bf16.msra.mxu0 0
        %653 = vmatprep.subr.bf16.mxu0 0
        %654 = vmatpush1.bf16.msra.mxu0 0
        %655 = vmatprep.subr.bf16.mxu0 0
        %656 = vmatpush1.bf16.msra.mxu0 0
        %657 = vmatprep.mubr.bf16.mxu0 0
        %658 = vmatmul.mubr.bf16.gmra.mrb[0].mxu0 %v553
        %v659 = vpop.f32.mrb[0].mxu0
        %v660 = vadd.f32 %v575, %v659
        %v661 = vpop.f32.mrb[0].mxu0
        %v662 = vpop.f32.mrb[0].mxu0
        %v663 = vpop.f32.mrb[0].mxu0
        %664 = vdwg.mxu0
        %v665 = vmax.f32 %v660, 0.0
        %v666 = vpack.c.bf16 %v665, %v665
        %v667 = vld [vmem:[#allocation8] sm:$0xf]
        %v668 = vld [vmem:[#allocation8 + $0x4] sm:$0xf]
        %v669 = vld [vmem:[#allocation8 + $0x8] sm:$0xf]
        %v670 = vld [vmem:[#allocation8 + $0xc] sm:$0xf]
        %v671 = vld [vmem:[#allocation8 + $0x10] sm:$0xf]
        %v672 = vld [vmem:[#allocation8 + $0x14] sm:$0xf]
        %v673 = vld [vmem:[#allocation8 + $0x18] sm:$0xf]
        %v674 = vld [vmem:[#allocation8 + $0x1c] sm:$0xf]
        %v675 = vld [vmem:[#allocation8 + $0x20] sm:$0xf]
        %v676 = vld [vmem:[#allocation8 + $0x24] sm:$0xf]
        %v677 = vld [vmem:[#allocation8 + $0x28] sm:$0xf]
        %v678 = vld [vmem:[#allocation8 + $0x2c] sm:$0xf]
        %v679 = vld [vmem:[#allocation8 + $0x30] sm:$0xf]
        %v680 = vld [vmem:[#allocation8 + $0x34] sm:$0xf]
        %v681 = vld [vmem:[#allocation8 + $0x38] sm:$0xf]
        %v682 = vld [vmem:[#allocation8 + $0x3c] sm:$0xf]
        %v683 = vld [vmem:[#allocation10] sm:$0x1]
        %v685 = vlaneseq
        %v686 = vshrl.u32 %v685, 7
        %v687 = vsub.s32 0, %v686
        %v688 = vrot.slane %v683, %v687
        %v706 = vunpack.c.l.b16 %v667
        %v707 = vunpack.c.l.b16 %v668
        %v708 = vunpack.c.l.b16 %v669
        %v709 = vunpack.c.l.b16 %v670
        %v710 = vunpack.c.l.b16 %v671
        %v711 = vunpack.c.l.b16 %v672
        %v712 = vunpack.c.l.b16 %v673
        %v713 = vunpack.c.l.b16 %v674
        %v714 = vunpack.c.l.b16 %v675
        %v715 = vunpack.c.l.b16 %v676
        %v716 = vunpack.c.l.b16 %v677
        %v717 = vunpack.c.l.b16 %v678
        %v718 = vunpack.c.l.b16 %v679
        %v719 = vunpack.c.l.b16 %v680
        %v720 = vunpack.c.l.b16 %v681
        %v721 = vunpack.c.l.b16 %v682
        %v722 = vpack.c.b16 %v707, %v706
        %v723 = vpack.c.b16 %v709, %v708
        %v724 = vpack.c.b16 %v711, %v710
        %v725 = vpack.c.b16 %v713, %v712
        %v726 = vpack.c.b16 %v715, %v714
        %v727 = vpack.c.b16 %v717, %v716
        %v728 = vpack.c.b16 %v719, %v718
        %v729 = vpack.c.b16 %v721, %v720
        %738 = vmatprep.subr.bf16.mxu0 0
        %739 = vmatpush1.bf16.msra.mxu0 %v722
        %740 = vmatprep.subr.bf16.mxu0 0
        %741 = vmatpush1.bf16.msra.mxu0 %v723
        %742 = vmatprep.subr.bf16.mxu0 0
        %743 = vmatpush1.bf16.msra.mxu0 %v724
        %744 = vmatprep.subr.bf16.mxu0 0
        %745 = vmatpush1.bf16.msra.mxu0 %v725
        %746 = vmatprep.subr.bf16.mxu0 0
        %747 = vmatpush1.bf16.msra.mxu0 %v726
        %748 = vmatprep.subr.bf16.mxu0 0
        %749 = vmatpush1.bf16.msra.mxu0 %v727
        %750 = vmatprep.subr.bf16.mxu0 0
        %751 = vmatpush1.bf16.msra.mxu0 %v728
        %752 = vmatprep.subr.bf16.mxu0 0
        %753 = vmatpush1.bf16.msra.mxu0 %v729
        %754 = vmatprep.subr.bf16.mxu0 0
        %755 = vmatpush1.bf16.msra.mxu0 0
        %756 = vmatprep.subr.bf16.mxu0 0
        %757 = vmatpush1.bf16.msra.mxu0 0
        %758 = vmatprep.subr.bf16.mxu0 0
        %759 = vmatpush1.bf16.msra.mxu0 0
        %760 = vmatprep.subr.bf16.mxu0 0
        %761 = vmatpush1.bf16.msra.mxu0 0
        %762 = vmatprep.subr.bf16.mxu0 0
        %763 = vmatpush1.bf16.msra.mxu0 0
        %764 = vmatprep.subr.bf16.mxu0 0
        %765 = vmatpush1.bf16.msra.mxu0 0
        %766 = vmatprep.subr.bf16.mxu0 0
        %767 = vmatpush1.bf16.msra.mxu0 0
        %768 = vmatprep.subr.bf16.mxu0 0
        %769 = vmatpush1.bf16.msra.mxu0 0
        %770 = vmatprep.mubr.bf16.mxu0 0
        %771 = vmatmul.mubr.bf16.gmra.mrb[0].mxu0 %v666
        %v772 = vpop.f32.mrb[0].mxu0
        %v773 = vadd.f32 %v688, %v772
        %v774 = vpop.f32.mrb[0].mxu0
        %v775 = vpop.f32.mrb[0].mxu0
        %v776 = vpop.f32.mrb[0].mxu0
        %777 = vdwg.mxu0
        %v778 = vmax.f32 %v773, 0.0
        %v779 = vpack.c.bf16 %v778, %v778
        %s780 = scalar_lea.vmem [#allocation8], 64
        %v781 = vld [vmem:[%s780] sm:$0xf]
        %v782 = vld [vmem:[%s780 + $0x4] sm:$0xf]
        %v783 = vld [vmem:[%s780 + $0x8] sm:$0xf]
        %v784 = vld [vmem:[%s780 + $0xc] sm:$0xf]
        %v785 = vld [vmem:[%s780 + $0x10] sm:$0xf]
        %v786 = vld [vmem:[%s780 + $0x14] sm:$0xf]
        %v787 = vld [vmem:[%s780 + $0x18] sm:$0xf]
        %v788 = vld [vmem:[%s780 + $0x1c] sm:$0xf]
        %v789 = vld [vmem:[%s780 + $0x20] sm:$0xf]
        %v790 = vld [vmem:[%s780 + $0x24] sm:$0xf]
        %v791 = vld [vmem:[%s780 + $0x28] sm:$0xf]
        %v792 = vld [vmem:[%s780 + $0x2c] sm:$0xf]
        %v793 = vld [vmem:[%s780 + $0x30] sm:$0xf]
        %v794 = vld [vmem:[%s780 + $0x34] sm:$0xf]
        %v795 = vld [vmem:[%s780 + $0x38] sm:$0xf]
        %v796 = vld [vmem:[%s780 + $0x3c] sm:$0xf]
        %s797 = scalar_lea.vmem [#allocation10], 1
        %v798 = vld [vmem:[%s797] sm:$0x1]
        %v800 = vlaneseq
        %v801 = vshrl.u32 %v800, 7
        %v802 = vsub.s32 0, %v801
        %v803 = vrot.slane %v798, %v802
        %v821 = vunpack.c.l.b16 %v781
        %v822 = vunpack.c.l.b16 %v782
        %v823 = vunpack.c.l.b16 %v783
        %v824 = vunpack.c.l.b16 %v784
        %v825 = vunpack.c.l.b16 %v785
        %v826 = vunpack.c.l.b16 %v786
        %v827 = vunpack.c.l.b16 %v787
        %v828 = vunpack.c.l.b16 %v788
        %v829 = vunpack.c.l.b16 %v789
        %v830 = vunpack.c.l.b16 %v790
        %v831 = vunpack.c.l.b16 %v791
        %v832 = vunpack.c.l.b16 %v792
        %v833 = vunpack.c.l.b16 %v793
        %v834 = vunpack.c.l.b16 %v794
        %v835 = vunpack.c.l.b16 %v795
        %v836 = vunpack.c.l.b16 %v796
        %v837 = vpack.c.b16 %v822, %v821
        %v838 = vpack.c.b16 %v824, %v823
        %v839 = vpack.c.b16 %v826, %v825
        %v840 = vpack.c.b16 %v828, %v827
        %v841 = vpack.c.b16 %v830, %v829
        %v842 = vpack.c.b16 %v832, %v831
        %v843 = vpack.c.b16 %v834, %v833
        %v844 = vpack.c.b16 %v836, %v835
        %853 = vmatprep.subr.bf16.mxu0 0
        %854 = vmatpush1.bf16.msra.mxu0 %v837
        %855 = vmatprep.subr.bf16.mxu0 0
        %856 = vmatpush1.bf16.msra.mxu0 %v838
        %857 = vmatprep.subr.bf16.mxu0 0
        %858 = vmatpush1.bf16.msra.mxu0 %v839
        %859 = vmatprep.subr.bf16.mxu0 0
        %860 = vmatpush1.bf16.msra.mxu0 %v840
        %861 = vmatprep.subr.bf16.mxu0 0
        %862 = vmatpush1.bf16.msra.mxu0 %v841
        %863 = vmatprep.subr.bf16.mxu0 0
        %864 = vmatpush1.bf16.msra.mxu0 %v842
        %865 = vmatprep.subr.bf16.mxu0 0
        %866 = vmatpush1.bf16.msra.mxu0 %v843
        %867 = vmatprep.subr.bf16.mxu0 0
        %868 = vmatpush1.bf16.msra.mxu0 %v844
        %869 = vmatprep.subr.bf16.mxu0 0
        %870 = vmatpush1.bf16.msra.mxu0 0
        %871 = vmatprep.subr.bf16.mxu0 0
        %872 = vmatpush1.bf16.msra.mxu0 0
        %873 = vmatprep.subr.bf16.mxu0 0
        %874 = vmatpush1.bf16.msra.mxu0 0
        %875 = vmatprep.subr.bf16.mxu0 0
        %876 = vmatpush1.bf16.msra.mxu0 0
        %877 = vmatprep.subr.bf16.mxu0 0
        %878 = vmatpush1.bf16.msra.mxu0 0
        %879 = vmatprep.subr.bf16.mxu0 0
        %880 = vmatpush1.bf16.msra.mxu0 0
        %881 = vmatprep.subr.bf16.mxu0 0
        %882 = vmatpush1.bf16.msra.mxu0 0
        %883 = vmatprep.subr.bf16.mxu0 0
        %884 = vmatpush1.bf16.msra.mxu0 0
        %885 = vmatprep.mubr.bf16.mxu0 0
        %886 = vmatmul.mubr.bf16.gmra.mrb[0].mxu0 %v779
        %v887 = vpop.f32.mrb[0].mxu0
        %v888 = vadd.f32 %v803, %v887
        %v889 = vpop.f32.mrb[0].mxu0
        %v890 = vpop.f32.mrb[0].mxu0
        %v891 = vpop.f32.mrb[0].mxu0
        %892 = vdwg.mxu0
        %v893 = vmax.f32 %v888, 0.0
        %v894 = vpack.c.bf16 %v893, %v893
        %v895 = vld [vmem:[#allocation11] sm:$0xff]
        %v896 = vld [vmem:[#allocation11 + $0x8] sm:$0xff]
        %v897 = vld [vmem:[#allocation11 + $0x10] sm:$0xff]
        %v898 = vld [vmem:[#allocation11 + $0x18] sm:$0xff]
        %v899 = vld [vmem:[#allocation11 + $0x20] sm:$0xff]
        %v900 = vld [vmem:[#allocation11 + $0x28] sm:$0xff]
        %v901 = vld [vmem:[#allocation11 + $0x30] sm:$0xff]
        %v902 = vld [vmem:[#allocation11 + $0x38] sm:$0xff]
        %v903 = vld [vmem:[#allocation11 + $0x40] sm:$0xff]
        %v904 = vld [vmem:[#allocation11 + $0x48] sm:$0xff]
        %v905 = vld [vmem:[#allocation11 + $0x50] sm:$0xff]
        %v906 = vld [vmem:[#allocation11 + $0x58] sm:$0xff]
        %v907 = vld [vmem:[#allocation11 + $0x60] sm:$0xff]
        %v908 = vld [vmem:[#allocation11 + $0x68] sm:$0xff]
        %v909 = vld [vmem:[#allocation11 + $0x70] sm:$0xff]
        %v910 = vld [vmem:[#allocation11 + $0x78] sm:$0xff]
        %v911 = vld [vmem:[#allocation13] sm:$0x3]
        %v913 = vlaneseq
        %v914 = vshrl.u32 %v913, 7
        %v915 = vsub.s32 0, %v914
        %v916 = vrot.slane %v911, %v915
        %v917 = vlaneseq
        %v918 = vshrl.u32 %v917, 7
        %v919 = vsub.s32 1, %v918
        %v920 = vrot.slane %v911, %v919
        %v939 = vunpack.c.l.b16 %v895
        %v940 = vunpack.c.h.b16 %v895
        %v941 = vunpack.c.l.b16 %v896
        %v942 = vunpack.c.h.b16 %v896
        %v943 = vunpack.c.l.b16 %v897
        %v944 = vunpack.c.h.b16 %v897
        %v945 = vunpack.c.l.b16 %v898
        %v946 = vunpack.c.h.b16 %v898
        %v947 = vunpack.c.l.b16 %v899
        %v948 = vunpack.c.h.b16 %v899
        %v949 = vunpack.c.l.b16 %v900
        %v950 = vunpack.c.h.b16 %v900
        %v951 = vunpack.c.l.b16 %v901
        %v952 = vunpack.c.h.b16 %v901
        %v953 = vunpack.c.l.b16 %v902
        %v954 = vunpack.c.h.b16 %v902
        %v955 = vunpack.c.l.b16 %v903
        %v956 = vunpack.c.h.b16 %v903
        %v957 = vunpack.c.l.b16 %v904
        %v958 = vunpack.c.h.b16 %v904
        %v959 = vunpack.c.l.b16 %v905
        %v960 = vunpack.c.h.b16 %v905
        %v961 = vunpack.c.l.b16 %v906
        %v962 = vunpack.c.h.b16 %v906
        %v963 = vunpack.c.l.b16 %v907
        %v964 = vunpack.c.h.b16 %v907
        %v965 = vunpack.c.l.b16 %v908
        %v966 = vunpack.c.h.b16 %v908
        %v967 = vunpack.c.l.b16 %v909
        %v968 = vunpack.c.h.b16 %v909
        %v969 = vunpack.c.l.b16 %v910
        %v970 = vunpack.c.h.b16 %v910
        %v971 = vpack.c.b16 %v941, %v939
        %v972 = vpack.c.b16 %v942, %v940
        %v973 = vpack.c.b16 %v945, %v943
        %v974 = vpack.c.b16 %v946, %v944
        %v975 = vpack.c.b16 %v949, %v947
        %v976 = vpack.c.b16 %v950, %v948
        %v977 = vpack.c.b16 %v953, %v951
        %v978 = vpack.c.b16 %v954, %v952
        %v979 = vpack.c.b16 %v957, %v955
        %v980 = vpack.c.b16 %v958, %v956
        %v981 = vpack.c.b16 %v961, %v959
        %v982 = vpack.c.b16 %v962, %v960
        %v983 = vpack.c.b16 %v965, %v963
        %v984 = vpack.c.b16 %v966, %v964
        %v985 = vpack.c.b16 %v969, %v967
        %v986 = vpack.c.b16 %v970, %v968
        %1003 = vmatprep.subr.bf16.mxu0 %v972
        %1004 = vmatpush1.bf16.msra.mxu0 %v971
        %1005 = vmatprep.subr.bf16.mxu0 %v974
        %1006 = vmatpush1.bf16.msra.mxu0 %v973
        %1007 = vmatprep.subr.bf16.mxu0 %v976
        %1008 = vmatpush1.bf16.msra.mxu0 %v975
        %1009 = vmatprep.subr.bf16.mxu0 %v978
        %1010 = vmatpush1.bf16.msra.mxu0 %v977
        %1011 = vmatprep.subr.bf16.mxu0 %v980
        %1012 = vmatpush1.bf16.msra.mxu0 %v979
        %1013 = vmatprep.subr.bf16.mxu0 %v982
        %1014 = vmatpush1.bf16.msra.mxu0 %v981
        %1015 = vmatprep.subr.bf16.mxu0 %v984
        %1016 = vmatpush1.bf16.msra.mxu0 %v983
        %1017 = vmatprep.subr.bf16.mxu0 %v986
        %1018 = vmatpush1.bf16.msra.mxu0 %v985
        %1019 = vmatprep.subr.bf16.mxu0 0
        %1020 = vmatpush1.bf16.msra.mxu0 0
        %1021 = vmatprep.subr.bf16.mxu0 0
        %1022 = vmatpush1.bf16.msra.mxu0 0
        %1023 = vmatprep.subr.bf16.mxu0 0
        %1024 = vmatpush1.bf16.msra.mxu0 0
        %1025 = vmatprep.subr.bf16.mxu0 0
        %1026 = vmatpush1.bf16.msra.mxu0 0
        %1027 = vmatprep.subr.bf16.mxu0 0
        %1028 = vmatpush1.bf16.msra.mxu0 0
        %1029 = vmatprep.subr.bf16.mxu0 0
        %1030 = vmatpush1.bf16.msra.mxu0 0
        %1031 = vmatprep.subr.bf16.mxu0 0
        %1032 = vmatpush1.bf16.msra.mxu0 0
        %1033 = vmatprep.subr.bf16.mxu0 0
        %1034 = vmatpush1.bf16.msra.mxu0 0
        %1035 = vmatprep.mubr.bf16.mxu0 0
        %1036 = vmatmul.mubr.bf16.gmra.mrb[0].mxu0 %v894
        %v1037 = vpop.f32.mrb[0].mxu0
        %v1038 = vadd.f32 %v916, %v1037
        %v1039 = vpop.f32.mrb[0].mxu0
        %v1040 = vadd.f32 %v920, %v1039
        %v1041 = vpop.f32.mrb[0].mxu0
        %v1042 = vpop.f32.mrb[0].mxu0
        %1043 = vdwg.mxu0
        %v1044 = vmul.f32 %v1040, 1.442695
        %v1045 = vpow.pop %v1044
        %vm1046 = vcmask 64512
        %1047 = vst.msk [vmem:[%s530] sm:$0xff] %vm1046, %v1038
        %1048 = vst.msk [vmem:[%s537] sm:$0xff] %vm1046, %v1045
        %v1049 = vld [vmem:[%s493] sm:$0xff]
        %v1050 = vmul.f32 %v1049, %v1045
        %v1051 = vadd.f32 %v1050, %v1038
        %1052 = vst.msk [vmem:[%s551] sm:$0xff] %vm1046, %v1051
        %v1053 = vadd.f32 %v1049, 0.0
        %s1054 = scalar_lea.vmem %s493, 8 [#allocation14]
        %v1055 = vld [vmem:[%s1054] sm:$0xff]
        %v1056 = vmul.f32 %v1055, %v1045
        %v1057 = vadd.f32 %v1056, %v1038
        %s1058 = scalar_lea.vmem %s551, 8 [#allocation20]
        %1059 = vst.msk [vmem:[%s1058] sm:$0xff] %vm1046, %v1057
        %v1060 = vadd.f32 %v1053, %v1055
        %s1061 = scalar_lea.vmem %s493, 16 [#allocation14]
        %v1062 = vld [vmem:[%s1061] sm:$0xff]
        %v1063 = vmul.f32 %v1062, %v1045
        %v1064 = vadd.f32 %v1063, %v1038
        %s1065 = scalar_lea.vmem %s551, 16 [#allocation20]
        %1066 = vst.msk [vmem:[%s1065] sm:$0xff] %vm1046, %v1064
        %v1067 = vadd.f32 %v1060, %v1062
        %v1068 = vmul.f32 %v1067, 0.33333334
        %v1069 = vmul.f32 %v1045, %v1068
        %v1070 = vadd.f32 %v1038, %v1069
        %1071 = vst.msk [vmem:[%s544] sm:$0xff] %vm1046, %v1070
        %s1072 = sand.u32 %s227, 1
        %s1073 = scalar_lea.sflag [#allocation4], %s1072
        %s1074 = sand.u32 %s227, 1
        %s1075 = smul.addr %s1074, 8
        %s1076 = scalar_lea.vmem [#allocation16], %s1075
        %s1077 = sand.u32 %s41, 1
        %s1078 = scalar_lea.sflag [#allocation18], %s1077
        %s1079 = sand.u32 %s253, 1
        %s1080 = smul.addr %s1079, 8
        %s1081 = scalar_lea.vmem [#allocation17], %s1080
        %s1082 = sand.u32 %s41, 1
        %s1083 = scalar_lea.sflag [#allocation18], %s1082
        %s1084 = sand.u32 %s279, 1
        %s1085 = smul.addr %s1084, 8
        %s1086 = scalar_lea.vmem [#allocation19], %s1085
        %s1087 = sand.u32 %s305, 1
        %s1088 = scalar_lea.sflag [#allocation21], %s1087
        %s1089 = sand.u32 %s305, 1
        %s1090 = smul.addr %s1089, 24
        %s1091 = scalar_lea.vmem [#allocation20], %s1090
        // Predicated region
        $region85: #{tpu_custom_call.1} parent=51 // pred_check
          %p1092 = pneg %p237
        $region86: #{tpu_custom_call.1} parent=51 // pred_check_branch
          %1094 = sbr.rel (%p1092) target = $region88
        $region87: #{tpu_custom_call.1} parent=51 // pred_region
          %s1096 = ssub.s32 128, 128
          %1097 = vsyncadd %s1073, %s1096
          %s1098 = smul.addr %s41, 128
          %s1099 = scalar_lea.hbm %s8, %s1098
          %s1101 = sshll.u32 %s1076, 4
          %s1102 = int_to_ptr.vmem [resolvable:$true] %s1101
          %1104 = dma.vmem_to_hbm [thread:$0]  %s1102, 128, %s1099, %s1073
        $region88: #{tpu_custom_call.1} parent=51 // pred_fallthru
          _
        // Predicated region
        $region89: #{tpu_custom_call.1} parent=51 // pred_check
          %p1105 = pneg %p263
        $region90: #{tpu_custom_call.1} parent=51 // pred_check_branch
          %1107 = sbr.rel (%p1105) target = $region92
        $region91: #{tpu_custom_call.1} parent=51 // pred_region
          %s1109 = ssub.s32 128, 128
          %1110 = vsyncadd %s1078, %s1109
          %s1111 = smul.addr %s41, 128
          %s1112 = scalar_lea.hbm %s9, %s1111
          %s1114 = sshll.u32 %s1081, 4
          %s1115 = int_to_ptr.vmem [resolvable:$true] %s1114
          %1117 = dma.vmem_to_hbm [thread:$0]  %s1115, 128, %s1112, %s1078
        $region92: #{tpu_custom_call.1} parent=51 // pred_fallthru
          _
        // Predicated region
        $region93: #{tpu_custom_call.1} parent=51 // pred_check
          %p1118 = pneg %p289
        $region94: #{tpu_custom_call.1} parent=51 // pred_check_branch
          %1120 = sbr.rel (%p1118) target = $region96
        $region95: #{tpu_custom_call.1} parent=51 // pred_region
          %s1122 = ssub.s32 128, 128
          %1123 = vsyncadd %s1083, %s1122
          %s1124 = smul.addr %s41, 128
          %s1125 = scalar_lea.hbm %s10, %s1124
          %s1127 = sshll.u32 %s1086, 4
          %s1128 = int_to_ptr.vmem [resolvable:$true] %s1127
          %1130 = dma.vmem_to_hbm [thread:$0]  %s1128, 128, %s1125, %s1083
        $region96: #{tpu_custom_call.1} parent=51 // pred_fallthru
          _
        // Predicated region
        $region97: #{tpu_custom_call.1} parent=51 // pred_check
          %p1131 = pneg %p315
        $region98: #{tpu_custom_call.1} parent=51 // pred_check_branch
          %1133 = sbr.rel (%p1131) target = $region100
        $region99: #{tpu_custom_call.1} parent=51 // pred_region
          %s1135 = ssub.s32 384, 384
          %1136 = vsyncadd %s1088, %s1135
          %s1137 = smul.addr %s41, 128
          %s1138 = scalar_lea.hbm %s11, %s1137
          %s1139 = sshll.u32 %s1091, 4
          %s1140 = int_to_ptr.vmem [resolvable:$true] %s1139
          %1145 = dma.vmem_to_hbm [thread:$0]  %s1140, 384, %s1138, %s1088, 128, 256, 8
        $region100: #{tpu_custom_call.1} parent=51 // pred_fallthru
          _
      $region52: #{tpu_custom_call.1} parent=5 // pred_fallthru
        _
      %p1146 = scmp.le.s32.totalorder 2, %s36
      // Predicated region
      $region101: #{tpu_custom_call.1} parent=5 // pred_check
        %p1147 = pneg %p1146
      $region102: #{tpu_custom_call.1} parent=5 // pred_check_branch
        %1149 = sbr.rel (%p1147) target = $region104
      $region103: #{tpu_custom_call.1} parent=5 // pred_region
        %s1150 = ssub.s32 %s36, 2
        // Predicated region
        $region105: #{tpu_custom_call.1} parent=103 // pred_check
          %p1151 = pneg %p243
        $region106: #{tpu_custom_call.1} parent=103 // pred_check_branch
          %1153 = sbr.rel (%p1151) target = $region108
        $region107: #{tpu_custom_call.1} parent=103 // pred_region
          %s1154 = sand.u32 %s228, 1
          %s1155 = scalar_lea.sflag [#allocation4], %s1154
          %s1156 = sand.u32 %s228, 1
          %s1157 = smul.addr %s1156, 8
          %s1158 = scalar_lea.vmem [#allocation16], %s1157
          %1159 = dma.done %s1155, 128
        $region108: #{tpu_custom_call.1} parent=103 // pred_fallthru
          _
        // Predicated region
        $region109: #{tpu_custom_call.1} parent=103 // pred_check
          %p1160 = pneg %p269
        $region110: #{tpu_custom_call.1} parent=103 // pred_check_branch
          %1162 = sbr.rel (%p1160) target = $region112
        $region111: #{tpu_custom_call.1} parent=103 // pred_region
          %s1163 = sand.u32 %s42, 1
          %s1164 = scalar_lea.sflag [#allocation18], %s1163
          %s1165 = sand.u32 %s254, 1
          %s1166 = smul.addr %s1165, 8
          %s1167 = scalar_lea.vmem [#allocation17], %s1166
          %1168 = dma.done %s1164, 128
        $region112: #{tpu_custom_call.1} parent=103 // pred_fallthru
          _
        // Predicated region
        $region113: #{tpu_custom_call.1} parent=103 // pred_check
          %p1169 = pneg %p295
        $region114: #{tpu_custom_call.1} parent=103 // pred_check_branch
          %1171 = sbr.rel (%p1169) target = $region116
        $region115: #{tpu_custom_call.1} parent=103 // pred_region
          %s1172 = sand.u32 %s42, 1
          %s1173 = scalar_lea.sflag [#allocation18], %s1172
          %s1174 = sand.u32 %s280, 1
          %s1175 = smul.addr %s1174, 8
          %s1176 = scalar_lea.vmem [#allocation19], %s1175
          %1177 = dma.done %s1173, 128
        $region116: #{tpu_custom_call.1} parent=103 // pred_fallthru
          _
        // Predicated region
        $region117: #{tpu_custom_call.1} parent=103 // pred_check
          %p1178 = pneg %p321
        $region118: #{tpu_custom_call.1} parent=103 // pred_check_branch
          %1180 = sbr.rel (%p1178) target = $region120
        $region119: #{tpu_custom_call.1} parent=103 // pred_region
          %s1181 = sand.u32 %s306, 1
          %s1182 = scalar_lea.sflag [#allocation21], %s1181
          %s1183 = sand.u32 %s306, 1
          %s1184 = smul.addr %s1183, 24
          %s1185 = scalar_lea.vmem [#allocation20], %s1184
          %1186 = dma.done %s1182, 384
        $region120: #{tpu_custom_call.1} parent=103 // pred_fallthru
          _
      $region104: #{tpu_custom_call.1} parent=5 // pred_fallthru
        _
    $region6: #{tpu_custom_call.1} parent=1 // loop_footer
      %s40 = sadd.s32 1, %s36
    $region7: #{tpu_custom_call.1} parent=1 // loop_footer_branch
      %35 = sbr.rel target = $region3
    $region8: #{tpu_custom_call.1} parent=1 // loop_exit
      _
    %1187 = vsyncpa [#allocation3], 1
    %s1188 = scalar_lea.sflag [#allocation3], 1
    %1189 = vsyncpa %s1188, 1
    %1190 = vsyncpa [#allocation6], 1
    %1191 = vsyncpa [#allocation9], 1
    %1192 = vsyncpa [#allocation12], 1
    %1193 = vsyncpa [#allocation15], 1
    %s1194 = scalar_lea.sflag [#allocation15], 1
    %1195 = vsyncpa %s1194, 1
    %1196 = vsyncpa [#allocation4], 1
    %s1197 = scalar_lea.sflag [#allocation4], 1
    %1198 = vsyncpa %s1197, 1
    %1199 = vsyncpa [#allocation18], 1
    %s1200 = scalar_lea.sflag [#allocation18], 1
    %1201 = vsyncpa %s1200, 1
    %1202 = vsyncpa [#allocation21], 1
    %s1203 = scalar_lea.sflag [#allocation21], 1
    %1204 = vsyncpa %s1203, 1

</llo_original>
